<compile_context>
chip_gen: v7x
topology: tpu7x:2x2x1
jax: 0.10.0
libtpu: 0.0.40
codegen_flags: <defaults>
</compile_context>

<pallas_src>
import jax
import jax.numpy as jnp
from jax.experimental import pallas as pl
from jax.experimental.pallas import tpu as pltpu


def _round_up(v, m):
    return ((v + m - 1) // m) * m


def _encoder_kernel(x_ref, w_ref, b_ref, o_ref):
    # x_ref: (TM, K)   streamed row tile (lane-dense, K = fold*D = 128)
    # w_ref: (K, N)    resident block-diagonal weight (N = fold*E)
    # b_ref: (1, N)    resident f32 bias (tiled)
    # o_ref: (TM, N)   streamed output tile (lane-dense)
    acc = jnp.dot(x_ref[...], w_ref[...], preferred_element_type=jnp.float32)
    o_ref[...] = (acc + b_ref[...]).astype(o_ref.dtype)


def customer_encoder_forward(x, weight, bias, *, tile_rows=16384,
                             compute_dtype=None):
    """Pallas forward pass of CustomerEncoder.

    Args:
      x:            [batch_size, num_nodes, input_dim] float32
      weight:       [embedding_dim, 1, input_dim] (nn.Conv1d weight layout)
      bias:         [embedding_dim]
      tile_rows:    original (un-folded) rows per grid step.
      compute_dtype: optional dtype for the x / weight streams (e.g.
                    jnp.bfloat16).  Accumulation and bias add stay f32.

    Returns:
      [batch_size, num_nodes, embedding_dim] in x.dtype.
    """
    batch_size, num_nodes, input_dim = x.shape
    embedding_dim = weight.shape[0]
    out_dtype = x.dtype
    m = batch_size * num_nodes

    # Lane-pack factor: fold `fold` consecutive rows into one 128-lane row.
    if input_dim < 128 and 128 % input_dim == 0:
        fold = 128 // input_dim
    else:
        fold = 1  # already lane-sized (or awkward D): plain (M, D) x (D, E)

    in_dtype = compute_dtype if compute_dtype is not None else x.dtype

    # ---- weight / bias packing (block-diagonal = fold copies of W^T) -------
    w2d = weight.reshape(embedding_dim, input_dim)            # (E, D)
    wT = w2d.T                                                # (D, E)
    if fold > 1:
        w_mat = jnp.kron(jnp.eye(fold, dtype=wT.dtype), wT)   # (fold*D, fold*E)
        b_mat = jnp.tile(bias, fold).reshape(1, fold * embedding_dim)
    else:
        w_mat = wT
        b_mat = bias.reshape(1, embedding_dim)
    w_mat = w_mat.astype(in_dtype)
    b_mat = b_mat.astype(jnp.float32)          # bias add stays f32 in-kernel

    k_dim = fold * input_dim                   # 128 when fold > 1
    n_dim = fold * embedding_dim

    # ---- x packing: pad M to a multiple of fold*8 (zero rows, sliced off) --
    m_pad = _round_up(max(m, 1), fold * 8)
    x2d = x.reshape(m, input_dim).astype(in_dtype)
    if m_pad != m:
        x2d = jnp.pad(x2d, ((0, m_pad - m), (0, 0)))
    m_folded = m_pad // fold
    x_packed = x2d.reshape(m_folded, k_dim)    # pure row-major reshape

    x_itemsize = x_packed.dtype.itemsize
    o_itemsize = jnp.dtype(out_dtype).itemsize if hasattr(out_dtype, "itemsize") is False else out_dtype.itemsize

    # ---- folded row-tile selection -----------------------------------------
    tm = max(8, _round_up(max(int(tile_rows) // fold, 1), 8))
    tm = min(tm, _round_up(m_folded, 8))

    # VMEM budget with lane/sublane padding: double-buffered x/out streams
    # plus resident weight + bias, kept <= ~24 MiB so an explicit 32 MiB
    # scoped limit is safe on every generation (v7x has 64 MiB per TC).
    x_row_bytes = _round_up(k_dim, 128) * x_itemsize
    o_row_bytes = _round_up(n_dim, 128) * o_itemsize
    resident = (_round_up(k_dim, 8) * _round_up(n_dim, 128) * w_mat.dtype.itemsize
                + 8 * _round_up(n_dim, 128) * 4)
    budget = (24 << 20) - resident
    max_tm = max(8, (budget // (2 * (x_row_bytes + o_row_bytes))) // 8 * 8)
    tm = min(tm, max_tm)

    # v7x megacore: the M axis is "parallel"; keep >= 2 grid steps for
    # mid/large inputs so both TensorCores (and the full HBM feed) are used.
    if m_folded >= 1024 and pl.cdiv(m_folded, tm) < 2:
        tm = max(8, _round_up(pl.cdiv(m_folded, 2), 8))

    grid = (pl.cdiv(m_folded, tm),)

    cost = pl.CostEstimate(
        flops=2 * m_folded * k_dim * n_dim,
        transcendentals=0,
        bytes_accessed=(x_packed.size * x_packed.dtype.itemsize
                        + w_mat.size * w_mat.dtype.itemsize
                        + b_mat.size * b_mat.dtype.itemsize
                        + m_folded * n_dim * o_itemsize),
    )

    out_packed = pl.pallas_call(
        _encoder_kernel,
        out_shape=jax.ShapeDtypeStruct((m_folded, n_dim), out_dtype),
        grid_spec=pl.GridSpec(
            grid=grid,
            in_specs=[
                # Streamed lane-dense row tiles of packed x.
                pl.BlockSpec((tm, k_dim), lambda i: (i, 0)),
                # Weight / bias: resident in VMEM across all grid steps.
                pl.BlockSpec((k_dim, n_dim), lambda i: (0, 0)),
                pl.BlockSpec((1, n_dim), lambda i: (0, 0)),
            ],
            out_specs=pl.BlockSpec((tm, n_dim), lambda i: (i, 0)),
        ),
        compiler_params=pltpu.CompilerParams(
            dimension_semantics=("parallel",),
            vmem_limit_bytes=32 * 1024 * 1024,
        ),
        cost_estimate=cost,
    )(x_packed, w_mat, b_mat)

    # (M/fold, fold*E) -> (M_pad, E) is a free row-major reshape; drop padding.
    out2d = out_packed.reshape(m_pad, embedding_dim)[:m]
    return out2d.reshape(batch_size, num_nodes, embedding_dim)


def customer_encoder_reference(x, weight, bias):
    """Pure-JAX reference of the PyTorch forward (for correctness check)."""
    e, _, d = weight.shape
    w2d = weight.reshape(e, d)
    return jnp.einsum("bnd,ed->bne", x, w2d) + bias[None, None, :]


if __name__ == "__main__":
    key = jax.random.PRNGKey(0)
    kx, kw, kb, kx2 = jax.random.split(key, 4)

    # --- primary small-shape check (shapes implied by the module forward) ---
    batch_size, num_nodes, input_dim, embedding_dim = 2, 8, 16, 32
    x = jax.random.normal(kx, (batch_size, num_nodes, input_dim), dtype=jnp.float32)
    weight = jax.random.normal(kw, (embedding_dim, 1, input_dim), dtype=jnp.float32) * 0.1
    bias = jax.random.normal(kb, (embedding_dim,), dtype=jnp.float32) * 0.1

    ref = customer_encoder_reference(x, weight, bias)
    out = jax.block_until_ready(customer_encoder_forward(x, weight, bias))
    assert out.shape == (batch_size, num_nodes, embedding_dim)
    assert jnp.allclose(out, ref, atol=1e-5, rtol=1e-5), "mismatch vs reference (small)"

    # --- multi-tile grid + partial final block ------------------------------
    # m = 320 rows -> 40 folded rows; tile_rows=128 -> folded tile of 16 ->
    # grid of 3 steps with a partial last block.
    b2, n2 = 4, 80
    x_big = jax.random.normal(kx2, (b2, n2, input_dim), dtype=jnp.float32)
    ref_big = customer_encoder_reference(x_big, weight, bias)
    out_big = jax.block_until_ready(
        customer_encoder_forward(x_big, weight, bias, tile_rows=128))
    assert out_big.shape == (b2, n2, embedding_dim)
    assert jnp.allclose(out_big, ref_big, atol=1e-5, rtol=1e-5), "mismatch vs reference (tiled)"

    # --- optional bf16 streams (f32 accumulation / f32 bias add) ------------
    # Looser tolerance reflects bf16 rounding of the x / weight inputs only.
    out_bf16 = jax.block_until_ready(
        customer_encoder_forward(x_big, weight, bias, tile_rows=128,
                                 compute_dtype=jnp.bfloat16))
    assert jnp.allclose(out_bf16, ref_big, atol=3e-2, rtol=3e-2), "mismatch vs reference (bf16)"

    print("KERNEL_OK")
</pallas_src>

<mosaic_0001>
module attributes {stable_mosaic.version = 11 : i64} {
  func.func @_encoder_kernel(%arg0: i32, %arg1: memref<8x128xf32, #tpu.memory_space<vmem>>, %arg2: memref<128x256xf32, #tpu.memory_space<vmem>>, %arg3: memref<1x256xf32, #tpu.memory_space<vmem>>, %arg4: memref<8x256xf32, #tpu.memory_space<vmem>>) attributes {dimension_semantics = [#tpu.dimension_semantics<parallel>], iteration_bounds = array<i64: 1>, scalar_prefetch = 0 : i64, scratch_operands = 0 : i64, tpu.core_type = #tpu.core_type<tc>, window_params = [{transform_indices = @transform_0, window_bounds = array<i64: 8, 128>}, {pipeline_mode = #tpu.pipeline_mode<synchronous>, transform_indices = @transform_1, window_bounds = array<i64: 128, 256>}, {pipeline_mode = #tpu.pipeline_mode<synchronous>, transform_indices = @transform_2, window_bounds = array<i64: 1, 256>}, {transform_indices = @transform_3, window_bounds = array<i64: 8, 256>}]} {
    %c0 = arith.constant 0 : index
    %c0_0 = arith.constant 0 : index
    %0 = vector.load %arg1[%c0, %c0_0] : memref<8x128xf32, #tpu.memory_space<vmem>>, vector<8x128xf32>
    %c0_1 = arith.constant 0 : index
    %c0_2 = arith.constant 0 : index
    %1 = vector.load %arg2[%c0_1, %c0_2] : memref<128x256xf32, #tpu.memory_space<vmem>>, vector<128x256xf32>
    %cst = arith.constant dense<0.000000e+00> : vector<8x256xf32>
    %2 = tpu.matmul %0, %1, %cst {dimension_numbers = #tpu.dot_dimension_numbers<[1], [0], [0], [1], [0, 0, 1, 1], [], []>} : vector<8x128xf32>, vector<128x256xf32>, vector<8x256xf32> -> vector<8x256xf32>
    %c0_3 = arith.constant 0 : index
    %c0_4 = arith.constant 0 : index
    %3 = vector.load %arg3[%c0_3, %c0_4] : memref<1x256xf32, #tpu.memory_space<vmem>>, vector<1x256xf32>
    %4 = vector.broadcast %3 : vector<1x256xf32> to vector<8x256xf32>
    %5 = arith.addf %2, %4 : vector<8x256xf32>
    %c0_5 = arith.constant 0 : index
    %c0_6 = arith.constant 0 : index
    %6 = vector.load %arg4[%c0_5, %c0_6] : memref<8x256xf32, #tpu.memory_space<vmem>>, vector<8x256xf32>
    tpu.vector_store %arg4[%c0_5, %c0_6], %5 {strides = array<i32>} : memref<8x256xf32, #tpu.memory_space<vmem>>, vector<8x256xf32>,
    return
  }
  func.func @transform_0(%arg0: i32) -> (i32, i32) {
    %c0_i32 = arith.constant 0 : i32
    %c0_i32_0 = arith.constant 0 : i32
    return %arg0, %c0_i32 : i32, i32
  }
  func.func @transform_1(%arg0: i32) -> (i32, i32) {
    %c0_i32 = arith.constant 0 : i32
    %c0_i32_0 = arith.constant 0 : i32
    %c0_i32_1 = arith.constant 0 : i32
    return %c0_i32, %c0_i32_0 : i32, i32
  }
  func.func @transform_2(%arg0: i32) -> (i32, i32) {
    %c0_i32 = arith.constant 0 : i32
    %c0_i32_0 = arith.constant 0 : i32
    %c0_i32_1 = arith.constant 0 : i32
    return %c0_i32, %c0_i32_0 : i32, i32
  }
  func.func @transform_3(%arg0: i32) -> (i32, i32) {
    %c0_i32 = arith.constant 0 : i32
    %c0_i32_0 = arith.constant 0 : i32
    return %arg0, %c0_i32 : i32, i32
  }
}

</mosaic_0001>

<llo_original>
// kernel: tpu_custom_call.1
$region0: #{tpu_custom_call.1}
  #allocation0 [shape = 'u32[]', space=smem, size = 0x4, offset = 0x4, fixed_abs, tag = 'smem constant byte address 0x4 - core index']
  #allocation1 [shape = 'u32[144,128]{1,0:T(1,128)}', space=vmem, size = 0x12000, scoped, tag = 'internal scratch']
  %s0 = inlined_call_operand.hbm [shape: f32[8,128], index: 0, kind: input, shape index: {}]
  %s1 = inlined_call_operand.hbm [shape: f32[128,256], index: 1, kind: input, shape index: {}]
  %s2 = inlined_call_operand.vmem [shape: f32[1,256], index: 2, kind: input, shape index: {}]
  %s3 = inlined_call_operand.hbm [shape: f32[8,256], index: 3, kind: output, shape index: {}]
  %s4 = sld [smem:[#allocation0]]
  $region30: #{tpu_custom_call.1} parent=0
    _
  %s6 = ssub.s32 1, %s4
  %s7 = scalar_select 0, %s6, %s4
  $region1: #{tpu_custom_call.1} parent=0
    #allocation2 [shape = 'u8[4096]{0}', space=vmem, size = 0x1000, scoped, tag = 'input window, operand 0, single buffered']
    #allocation3 [shape = 's32[1]{0}', space=sflag, size = 0x4, scoped, tag = 'scoped memory for tpu_custom_call.1']
    #allocation4 [shape = 's32[1]{0}', space=sflag, size = 0x4, scoped, tag = 'scoped memory for tpu_custom_call.1']
    #allocation5 [shape = 'u8[131072]{0}', space=vmem, size = 0x20000, scoped, tag = 'input window, operand 1, single buffered']
    #allocation6 [shape = 's32[1]{0}', space=sflag, size = 0x4, scoped, tag = 'scoped memory for tpu_custom_call.1']
    #allocation7 [shape = 'u8[8192]{0}', space=vmem, size = 0x2000, scoped, tag = 'output window, operand 0, single buffered']
    %8 = vsyncpa [#allocation3], 0
    %9 = vsyncpa [#allocation6], 0
    %10 = vsyncpa [#allocation4], 0
    // Predicated region
    $region2: #{tpu_custom_call.1} parent=1 // pred_check
      _
    $region3: #{tpu_custom_call.1} parent=1 // pred_check_branch
      %12 = sbr.rel (0) target = $region5
    $region4: #{tpu_custom_call.1} parent=1 // pred_region
      %s14 = ssub.s32 128, 128
      %15 = vsyncadd [#allocation3], %s14
      %s17 = sshll.u32 [#allocation2], 4
      %s18 = int_to_ptr.vmem [resolvable:$true] %s17
      %20 = dma.hbm_to_vmem [thread:$0]  %s0, 128, %s18, [#allocation3]
    $region5: #{tpu_custom_call.1} parent=1 // pred_fallthru
      _
    // Predicated region
    $region6: #{tpu_custom_call.1} parent=1 // pred_check
      _
    $region7: #{tpu_custom_call.1} parent=1 // pred_check_branch
      %22 = sbr.rel (0) target = $region9
    $region8: #{tpu_custom_call.1} parent=1 // pred_region
      %s24 = ssub.s32 4096, 4096
      %25 = vsyncadd [#allocation6], %s24
      %s26 = sshll.u32 [#allocation5], 4
      %s27 = int_to_ptr.vmem [resolvable:$true] %s26
      %32 = dma.hbm_to_vmem [thread:$0]  %s1, 4096, %s27, [#allocation6], 256, 256, 16
    $region9: #{tpu_custom_call.1} parent=1 // pred_fallthru
      _
    // Predicated region
    $region10: #{tpu_custom_call.1} parent=1 // pred_check
      _
    $region11: #{tpu_custom_call.1} parent=1 // pred_check_branch
      %34 = sbr.rel (0) target = $region13
    $region12: #{tpu_custom_call.1} parent=1 // pred_region
      _
    $region13: #{tpu_custom_call.1} parent=1 // pred_fallthru
      _
    // Predicated region
    $region14: #{tpu_custom_call.1} parent=1 // pred_check
      _
    $region15: #{tpu_custom_call.1} parent=1 // pred_check_branch
      %36 = sbr.rel (0) target = $region17
    $region16: #{tpu_custom_call.1} parent=1 // pred_region
      %37 = dma.done [#allocation3], 128
    $region17: #{tpu_custom_call.1} parent=1 // pred_fallthru
      _
    // Predicated region
    $region18: #{tpu_custom_call.1} parent=1 // pred_check
      _
    $region19: #{tpu_custom_call.1} parent=1 // pred_check_branch
      %39 = sbr.rel (0) target = $region21
    $region20: #{tpu_custom_call.1} parent=1 // pred_region
      %40 = dma.done [#allocation6], 4096
    $region21: #{tpu_custom_call.1} parent=1 // pred_fallthru
      _
    %v41 = vld [vmem:[#allocation2] sm:$0xff]
    %v42 = vld [vmem:[#allocation5] sm:$0xff]
    %v43 = vld [vmem:[#allocation5 + $0x8] sm:$0xff]
    %v44 = vld [vmem:[#allocation5 + $0x10] sm:$0xff]
    %v45 = vld [vmem:[#allocation5 + $0x18] sm:$0xff]
    %v46 = vld [vmem:[#allocation5 + $0x20] sm:$0xff]
    %v47 = vld [vmem:[#allocation5 + $0x28] sm:$0xff]
    %v48 = vld [vmem:[#allocation5 + $0x30] sm:$0xff]
    %v49 = vld [vmem:[#allocation5 + $0x38] sm:$0xff]
    %v50 = vld [vmem:[#allocation5 + $0x40] sm:$0xff]
    %v51 = vld [vmem:[#allocation5 + $0x48] sm:$0xff]
    %v52 = vld [vmem:[#allocation5 + $0x50] sm:$0xff]
    %v53 = vld [vmem:[#allocation5 + $0x58] sm:$0xff]
    %v54 = vld [vmem:[#allocation5 + $0x60] sm:$0xff]
    %v55 = vld [vmem:[#allocation5 + $0x68] sm:$0xff]
    %v56 = vld [vmem:[#allocation5 + $0x70] sm:$0xff]
    %v57 = vld [vmem:[#allocation5 + $0x78] sm:$0xff]
    %v58 = vld [vmem:[#allocation5 + $0x80] sm:$0xff]
    %v59 = vld [vmem:[#allocation5 + $0x88] sm:$0xff]
    %v60 = vld [vmem:[#allocation5 + $0x90] sm:$0xff]
    %v61 = vld [vmem:[#allocation5 + $0x98] sm:$0xff]
    %v62 = vld [vmem:[#allocation5 + $0xa0] sm:$0xff]
    %v63 = vld [vmem:[#allocation5 + $0xa8] sm:$0xff]
    %v64 = vld [vmem:[#allocation5 + $0xb0] sm:$0xff]
    %v65 = vld [vmem:[#allocation5 + $0xb8] sm:$0xff]
    %v66 = vld [vmem:[#allocation5 + $0xc0] sm:$0xff]
    %v67 = vld [vmem:[#allocation5 + $0xc8] sm:$0xff]
    %v68 = vld [vmem:[#allocation5 + $0xd0] sm:$0xff]
    %v69 = vld [vmem:[#allocation5 + $0xd8] sm:$0xff]
    %v70 = vld [vmem:[#allocation5 + $0xe0] sm:$0xff]
    %v71 = vld [vmem:[#allocation5 + $0xe8] sm:$0xff]
    %v72 = vld [vmem:[#allocation5 + $0xf0] sm:$0xff]
    %v73 = vld [vmem:[#allocation5 + $0xf8] sm:$0xff]
    %v74 = vld [vmem:[%s2] sm:$0x3]
    %v76 = vlaneseq
    %v77 = vshrl.u32 %v76, 7
    %v78 = vsub.s32 0, %v77
    %v79 = vrot.slane %v74, %v78
    %v80 = vlaneseq
    %v81 = vshrl.u32 %v80, 7
    %v82 = vsub.s32 1, %v81
    %v83 = vrot.slane %v74, %v82
    %86 = vmatprep.subr.mxu0 %v43
    %87 = vmatpush1.msra.mxu0 %v42
    %88 = vmatprep.subr.mxu0 %v45
    %89 = vmatpush1.msra.mxu0 %v44
    %90 = vmatprep.subr.mxu0 %v47
    %91 = vmatpush1.msra.mxu0 %v46
    %92 = vmatprep.subr.mxu0 %v49
    %93 = vmatpush1.msra.mxu0 %v48
    %94 = vmatprep.subr.mxu0 %v51
    %95 = vmatpush1.msra.mxu0 %v50
    %96 = vmatprep.subr.mxu0 %v53
    %97 = vmatpush1.msra.mxu0 %v52
    %98 = vmatprep.subr.mxu0 %v55
    %99 = vmatpush1.msra.mxu0 %v54
    %100 = vmatprep.subr.mxu0 %v57
    %101 = vmatpush1.msra.mxu0 %v56
    %102 = vmatprep.subr.mxu0 %v59
    %103 = vmatpush1.msra.mxu0 %v58
    %104 = vmatprep.subr.mxu0 %v61
    %105 = vmatpush1.msra.mxu0 %v60
    %106 = vmatprep.subr.mxu0 %v63
    %107 = vmatpush1.msra.mxu0 %v62
    %108 = vmatprep.subr.mxu0 %v65
    %109 = vmatpush1.msra.mxu0 %v64
    %110 = vmatprep.subr.mxu0 %v67
    %111 = vmatpush1.msra.mxu0 %v66
    %112 = vmatprep.subr.mxu0 %v69
    %113 = vmatpush1.msra.mxu0 %v68
    %114 = vmatprep.subr.mxu0 %v71
    %115 = vmatpush1.msra.mxu0 %v70
    %116 = vmatprep.subr.mxu0 %v73
    %117 = vmatpush1.msra.mxu0 %v72
    %118 = vmatprep.subr.mxu0 0.0
    %119 = vmatpush1.msra.mxu0 0.0
    %120 = vmatprep.subr.mxu0 0.0
    %121 = vmatpush1.msra.mxu0 0.0
    %122 = vmatprep.subr.mxu0 0.0
    %123 = vmatpush1.msra.mxu0 0.0
    %124 = vmatprep.subr.mxu0 0.0
    %125 = vmatpush1.msra.mxu0 0.0
    %126 = vmatprep.subr.mxu0 0.0
    %127 = vmatpush1.msra.mxu0 0.0
    %128 = vmatprep.subr.mxu0 0.0
    %129 = vmatpush1.msra.mxu0 0.0
    %130 = vmatprep.subr.mxu0 0.0
    %131 = vmatpush1.msra.mxu0 0.0
    %132 = vmatprep.subr.mxu0 0.0
    %133 = vmatpush1.msra.mxu0 0.0
    %134 = vmatprep.subr.mxu0 0.0
    %135 = vmatpush1.msra.mxu0 0.0
    %136 = vmatprep.subr.mxu0 0.0
    %137 = vmatpush1.msra.mxu0 0.0
    %138 = vmatprep.subr.mxu0 0.0
    %139 = vmatpush1.msra.mxu0 0.0
    %140 = vmatprep.subr.mxu0 0.0
    %141 = vmatpush1.msra.mxu0 0.0
    %142 = vmatprep.subr.mxu0 0.0
    %143 = vmatpush1.msra.mxu0 0.0
    %144 = vmatprep.subr.mxu0 0.0
    %145 = vmatpush1.msra.mxu0 0.0
    %146 = vmatprep.subr.mxu0 0.0
    %147 = vmatpush1.msra.mxu0 0.0
    %148 = vmatprep.subr.mxu0 0.0
    %149 = vmatpush1.msra.mxu0 0.0
    %150 = vmatprep.mubr.f32.mxu0 0.0
    %151 = vmatmul.mubr.f32.gmra.mrb[0].mxu0 %v41
    %v152 = vpop.f32.mrb[0].mxu0
    %v153 = vadd.f32 %v79, %v152
    %v154 = vpop.f32.mrb[0].mxu0
    %v155 = vadd.f32 %v83, %v154
    %156 = vdwg.mxu0
    %157 = vst [vmem:[#allocation7] sm:$0xff] %v153
    %158 = vst [vmem:[#allocation7 + $0x8] sm:$0xff] %v155
    // Predicated region
    $region22: #{tpu_custom_call.1} parent=1 // pred_check
      _
    $region23: #{tpu_custom_call.1} parent=1 // pred_check_branch
      %160 = sbr.rel (0) target = $region25
    $region24: #{tpu_custom_call.1} parent=1 // pred_region
      %s162 = ssub.s32 256, 256
      %163 = vsyncadd [#allocation4], %s162
      %s165 = sshll.u32 [#allocation7], 4
      %s166 = int_to_ptr.vmem [resolvable:$true] %s165
      %168 = dma.vmem_to_hbm [thread:$0]  %s166, 256, %s3, [#allocation4]
    $region25: #{tpu_custom_call.1} parent=1 // pred_fallthru
      _
    // Predicated region
    $region26: #{tpu_custom_call.1} parent=1 // pred_check
      _
    $region27: #{tpu_custom_call.1} parent=1 // pred_check_branch
      %170 = sbr.rel (0) target = $region29
    $region28: #{tpu_custom_call.1} parent=1 // pred_region
      %171 = dma.done [#allocation4], 256
    $region29: #{tpu_custom_call.1} parent=1 // pred_fallthru
      _
    %172 = vsyncpa [#allocation3], 1
    %173 = vsyncpa [#allocation6], 1
    %174 = vsyncpa [#allocation4], 1

</llo_original>
